<compile_context>
chip_gen: v7x
topology: tpu7x:2x2x1
jax: 0.10.0
libtpu: 0.0.40
codegen_flags: <defaults>
</compile_context>

<pallas_src>
import jax
import jax.numpy as jnp
from jax import lax
from jax.experimental import pallas as pl
from jax.experimental.pallas import tpu as pltpu


def _round_up(n, m):
    return ((n + m - 1) // m) * m


def _seq_classifier_kernel(x_ref, wih_t_ref, whh_t_ref, b_ref,
                           wro_t_ref, bro_ref, out_ref, xproj_ref):
    T, B, D = x_ref.shape
    H = whh_t_ref.shape[0]

    # ---- hoisted, non-recurrent input projection: one batched matmul ----
    x_all = x_ref[...].reshape(T * B, D)                            # (T*B, D)
    xproj = (jnp.dot(x_all, wih_t_ref[...],
                     preferred_element_type=jnp.float32)
             + b_ref[...])                                          # bias bcast once
    xproj_ref[...] = xproj.reshape(T, B, H)

    # Keep the recurrent weight resident in vregs across the unrolled loop.
    whh_t = whh_t_ref[...]                                          # (H, H)

    def step(t, h):
        pre = xproj_ref[t] + jnp.dot(h, whh_t,
                                     preferred_element_type=jnp.float32)
        return jnp.tanh(pre)

    h_last = lax.fori_loop(0, T, step,
                           jnp.zeros((B, H), jnp.float32),
                           unroll=True)

    # ---- readout: y = h_T @ W_ro^T + b_ro (lane-dense padded store) ----
    y = (jnp.dot(h_last, wro_t_ref[...],
                 preferred_element_type=jnp.float32)
         + bro_ref[...])
    out_ref[...] = y.astype(out_ref.dtype)


def sequence_classifier(x, w_ih, w_hh, b_ih, b_hh, w_ro, b_ro):
    """x: (T, B, D) float32. Returns (B, O) = Linear(tanh-RNN(x)[-1])."""
    x = jnp.asarray(x, jnp.float32)
    T, B, D = x.shape
    H = w_ih.shape[0]
    O = w_ro.shape[0]
    if T == 0:
        raise ValueError("sequence_classifier requires T >= 1")

    # Lane/sublane-friendly padded sizes. Zero padding is exact: padded hidden
    # columns stay identically 0 through tanh(0)=0 and contribute 0 to real
    # columns; padded batch rows are sliced off at the end.
    Hp = max(_round_up(H, 128), 128)
    Op = max(_round_up(O, 128), 128)
    Bp = max(_round_up(B, 8), 8)

    x_p = jnp.pad(x, ((0, 0), (0, Bp - B), (0, 0)))

    wih_t = jnp.zeros((D, Hp), jnp.float32).at[:, :H].set(
        jnp.asarray(w_ih, jnp.float32).T)
    whh_t = jnp.zeros((Hp, Hp), jnp.float32).at[:H, :H].set(
        jnp.asarray(w_hh, jnp.float32).T)
    b = jnp.zeros((1, Hp), jnp.float32).at[0, :H].set(
        jnp.asarray(b_ih, jnp.float32) + jnp.asarray(b_hh, jnp.float32))
    wro_t = jnp.zeros((Hp, Op), jnp.float32).at[:H, :O].set(
        jnp.asarray(w_ro, jnp.float32).T)
    bro = jnp.zeros((1, Op), jnp.float32).at[0, :O].set(
        jnp.asarray(b_ro, jnp.float32))

    vmem = pl.BlockSpec(memory_space=pltpu.MemorySpace.VMEM)
    y_p = pl.pallas_call(
        _seq_classifier_kernel,
        out_shape=jax.ShapeDtypeStruct((Bp, Op), jnp.float32),
        in_specs=[vmem] * 6,
        out_specs=vmem,
        scratch_shapes=[pltpu.VMEM((T, Bp, Hp), jnp.float32)],
        # TODO(synk): for large B on v7x, add a leading "parallel" batch grid
        # axis so both TensorCores get work; unnecessary at these tiny shapes.
    )(x_p, wih_t, whh_t, b, wro_t, bro)

    return y_p[:B, :O]


def _reference(x, w_ih, w_hh, b_ih, b_hh, w_ro, b_ro):
    T, B, D = x.shape
    H = w_ih.shape[0]
    h = jnp.zeros((B, H), jnp.float32)
    for t in range(T):
        h = jnp.tanh(x[t] @ w_ih.T + h @ w_hh.T + b_ih + b_hh)
    return h @ w_ro.T + b_ro


if __name__ == "__main__":
    # Small shapes consistent with the forward: x is (seq, batch, input)
    T, B, D, H, O = 8, 8, 16, 32, 8

    key = jax.random.PRNGKey(0)
    k_x, k_wih, k_whh, k_bih, k_bhh, k_wro = jax.random.split(key, 6)

    x = jax.random.normal(k_x, (T, B, D), jnp.float32)

    # RNN cell params (PyTorch-style uniform(-1/sqrt(H), 1/sqrt(H)))
    bound = 1.0 / jnp.sqrt(jnp.float32(H))
    w_ih = jax.random.uniform(k_wih, (H, D), jnp.float32, -bound, bound)
    w_hh = jax.random.uniform(k_whh, (H, H), jnp.float32, -bound, bound)
    b_ih = jax.random.uniform(k_bih, (H,), jnp.float32, -bound, bound)
    b_hh = jax.random.uniform(k_bhh, (H,), jnp.float32, -bound, bound)

    # Readout: xavier_normal_ for the 2-D weight, zero bias (deterministic).
    xavier_std = jnp.sqrt(2.0 / (H + O))
    w_ro = jax.random.normal(k_wro, (O, H), jnp.float32) * xavier_std
    b_ro = jnp.zeros((O,), jnp.float32)

    y = sequence_classifier(x, w_ih, w_hh, b_ih, b_hh, w_ro, b_ro)
    y = jax.block_until_ready(y)

    y_ref = _reference(x, w_ih, w_hh, b_ih, b_hh, w_ro, b_ro)
    assert y.shape == (B, O)
    assert jnp.allclose(y, y_ref, atol=1e-5, rtol=1e-5), (
        f"max abs err {jnp.max(jnp.abs(y - y_ref))}")

    print("KERNEL_OK")
</pallas_src>

<mosaic_0001>
module attributes {stable_mosaic.version = 11 : i64} {
  func.func @_seq_classifier_kernel(%arg0: memref<8x8x16xf32, #tpu.memory_space<vmem>>, %arg1: memref<16x128xf32, #tpu.memory_space<vmem>>, %arg2: memref<128x128xf32, #tpu.memory_space<vmem>>, %arg3: memref<1x128xf32, #tpu.memory_space<vmem>>, %arg4: memref<128x128xf32, #tpu.memory_space<vmem>>, %arg5: memref<1x128xf32, #tpu.memory_space<vmem>>, %arg6: memref<8x128xf32, #tpu.memory_space<vmem>>, %arg7: memref<8x8x128xf32, #tpu.memory_space<vmem>>) attributes {dimension_semantics = [], scalar_prefetch = 0 : i64, scratch_operands = 1 : i64, tpu.core_type = #tpu.core_type<tc>} {
    %c0 = arith.constant 0 : index
    %c0_0 = arith.constant 0 : index
    %c0_1 = arith.constant 0 : index
    %0 = vector.load %arg0[%c0, %c0_0, %c0_1] : memref<8x8x16xf32, #tpu.memory_space<vmem>>, vector<8x8x16xf32>
    %1 = vector.shape_cast %0 : vector<8x8x16xf32> to vector<64x16xf32>
    %c0_2 = arith.constant 0 : index
    %c0_3 = arith.constant 0 : index
    %2 = vector.load %arg1[%c0_2, %c0_3] : memref<16x128xf32, #tpu.memory_space<vmem>>, vector<16x128xf32>
    %cst = arith.constant dense<0.000000e+00> : vector<64x128xf32>
    %3 = tpu.matmul %1, %2, %cst {dimension_numbers = #tpu.dot_dimension_numbers<[1], [0], [0], [1], [0, 0, 1, 1], [], []>} : vector<64x16xf32>, vector<16x128xf32>, vector<64x128xf32> -> vector<64x128xf32>
    %c0_4 = arith.constant 0 : index
    %c0_5 = arith.constant 0 : index
    %4 = vector.load %arg3[%c0_4, %c0_5] : memref<1x128xf32, #tpu.memory_space<vmem>>, vector<1x128xf32>
    %5 = vector.broadcast %4 : vector<1x128xf32> to vector<64x128xf32>
    %6 = arith.addf %3, %5 : vector<64x128xf32>
    %7 = vector.shape_cast %6 : vector<64x128xf32> to vector<8x8x128xf32>
    %c0_6 = arith.constant 0 : index
    %c0_7 = arith.constant 0 : index
    %c0_8 = arith.constant 0 : index
    %8 = vector.load %arg7[%c0_6, %c0_7, %c0_8] : memref<8x8x128xf32, #tpu.memory_space<vmem>>, vector<8x8x128xf32>
    tpu.vector_store %arg7[%c0_6, %c0_7, %c0_8], %7 {strides = array<i32>} : memref<8x8x128xf32, #tpu.memory_space<vmem>>, vector<8x8x128xf32>,
    %c0_9 = arith.constant 0 : index
    %c0_10 = arith.constant 0 : index
    %9 = vector.load %arg2[%c0_9, %c0_10] : memref<128x128xf32, #tpu.memory_space<vmem>>, vector<128x128xf32>
    %cst_11 = arith.constant 0.000000e+00 : f32
    %10 = vector.broadcast %cst_11 : f32 to vector<8x128xf32>
    %c0_i32 = arith.constant 0 : i32
    %11 = arith.index_cast %c0_i32 : i32 to index
    %c0_12 = arith.constant 0 : index
    %c0_13 = arith.constant 0 : index
    %12 = vector.load %arg7[%11, %c0_12, %c0_13] : memref<8x8x128xf32, #tpu.memory_space<vmem>>, vector<1x8x128xf32>
    %13 = vector.shape_cast %12 : vector<1x8x128xf32> to vector<8x128xf32>
    %cst_14 = arith.constant dense<0.000000e+00> : vector<8x128xf32>
    %14 = tpu.matmul %10, %9, %cst_14 {dimension_numbers = #tpu.dot_dimension_numbers<[1], [0], [0], [1], [0, 0, 1, 1], [], []>} : vector<8x128xf32>, vector<128x128xf32>, vector<8x128xf32> -> vector<8x128xf32>
    %15 = arith.addf %13, %14 : vector<8x128xf32>
    %16 = math.tanh %15 : vector<8x128xf32>
    %c1_i32 = arith.constant 1 : i32
    %17 = arith.index_cast %c1_i32 : i32 to index
    %c0_15 = arith.constant 0 : index
    %c0_16 = arith.constant 0 : index
    %18 = vector.load %arg7[%17, %c0_15, %c0_16] : memref<8x8x128xf32, #tpu.memory_space<vmem>>, vector<1x8x128xf32>
    %19 = vector.shape_cast %18 : vector<1x8x128xf32> to vector<8x128xf32>
    %cst_17 = arith.constant dense<0.000000e+00> : vector<8x128xf32>
    %20 = tpu.matmul %16, %9, %cst_17 {dimension_numbers = #tpu.dot_dimension_numbers<[1], [0], [0], [1], [0, 0, 1, 1], [], []>} : vector<8x128xf32>, vector<128x128xf32>, vector<8x128xf32> -> vector<8x128xf32>
    %21 = arith.addf %19, %20 : vector<8x128xf32>
    %22 = math.tanh %21 : vector<8x128xf32>
    %c2_i32 = arith.constant 2 : i32
    %23 = arith.index_cast %c2_i32 : i32 to index
    %c0_18 = arith.constant 0 : index
    %c0_19 = arith.constant 0 : index
    %24 = vector.load %arg7[%23, %c0_18, %c0_19] : memref<8x8x128xf32, #tpu.memory_space<vmem>>, vector<1x8x128xf32>
    %25 = vector.shape_cast %24 : vector<1x8x128xf32> to vector<8x128xf32>
    %cst_20 = arith.constant dense<0.000000e+00> : vector<8x128xf32>
    %26 = tpu.matmul %22, %9, %cst_20 {dimension_numbers = #tpu.dot_dimension_numbers<[1], [0], [0], [1], [0, 0, 1, 1], [], []>} : vector<8x128xf32>, vector<128x128xf32>, vector<8x128xf32> -> vector<8x128xf32>
    %27 = arith.addf %25, %26 : vector<8x128xf32>
    %28 = math.tanh %27 : vector<8x128xf32>
    %c3_i32 = arith.constant 3 : i32
    %29 = arith.index_cast %c3_i32 : i32 to index
    %c0_21 = arith.constant 0 : index
    %c0_22 = arith.constant 0 : index
    %30 = vector.load %arg7[%29, %c0_21, %c0_22] : memref<8x8x128xf32, #tpu.memory_space<vmem>>, vector<1x8x128xf32>
    %31 = vector.shape_cast %30 : vector<1x8x128xf32> to vector<8x128xf32>
    %cst_23 = arith.constant dense<0.000000e+00> : vector<8x128xf32>
    %32 = tpu.matmul %28, %9, %cst_23 {dimension_numbers = #tpu.dot_dimension_numbers<[1], [0], [0], [1], [0, 0, 1, 1], [], []>} : vector<8x128xf32>, vector<128x128xf32>, vector<8x128xf32> -> vector<8x128xf32>
    %33 = arith.addf %31, %32 : vector<8x128xf32>
    %34 = math.tanh %33 : vector<8x128xf32>
    %c4_i32 = arith.constant 4 : i32
    %35 = arith.index_cast %c4_i32 : i32 to index
    %c0_24 = arith.constant 0 : index
    %c0_25 = arith.constant 0 : index
    %36 = vector.load %arg7[%35, %c0_24, %c0_25] : memref<8x8x128xf32, #tpu.memory_space<vmem>>, vector<1x8x128xf32>
    %37 = vector.shape_cast %36 : vector<1x8x128xf32> to vector<8x128xf32>
    %cst_26 = arith.constant dense<0.000000e+00> : vector<8x128xf32>
    %38 = tpu.matmul %34, %9, %cst_26 {dimension_numbers = #tpu.dot_dimension_numbers<[1], [0], [0], [1], [0, 0, 1, 1], [], []>} : vector<8x128xf32>, vector<128x128xf32>, vector<8x128xf32> -> vector<8x128xf32>
    %39 = arith.addf %37, %38 : vector<8x128xf32>
    %40 = math.tanh %39 : vector<8x128xf32>
    %c5_i32 = arith.constant 5 : i32
    %41 = arith.index_cast %c5_i32 : i32 to index
    %c0_27 = arith.constant 0 : index
    %c0_28 = arith.constant 0 : index
    %42 = vector.load %arg7[%41, %c0_27, %c0_28] : memref<8x8x128xf32, #tpu.memory_space<vmem>>, vector<1x8x128xf32>
    %43 = vector.shape_cast %42 : vector<1x8x128xf32> to vector<8x128xf32>
    %cst_29 = arith.constant dense<0.000000e+00> : vector<8x128xf32>
    %44 = tpu.matmul %40, %9, %cst_29 {dimension_numbers = #tpu.dot_dimension_numbers<[1], [0], [0], [1], [0, 0, 1, 1], [], []>} : vector<8x128xf32>, vector<128x128xf32>, vector<8x128xf32> -> vector<8x128xf32>
    %45 = arith.addf %43, %44 : vector<8x128xf32>
    %46 = math.tanh %45 : vector<8x128xf32>
    %c6_i32 = arith.constant 6 : i32
    %47 = arith.index_cast %c6_i32 : i32 to index
    %c0_30 = arith.constant 0 : index
    %c0_31 = arith.constant 0 : index
    %48 = vector.load %arg7[%47, %c0_30, %c0_31] : memref<8x8x128xf32, #tpu.memory_space<vmem>>, vector<1x8x128xf32>
    %49 = vector.shape_cast %48 : vector<1x8x128xf32> to vector<8x128xf32>
    %cst_32 = arith.constant dense<0.000000e+00> : vector<8x128xf32>
    %50 = tpu.matmul %46, %9, %cst_32 {dimension_numbers = #tpu.dot_dimension_numbers<[1], [0], [0], [1], [0, 0, 1, 1], [], []>} : vector<8x128xf32>, vector<128x128xf32>, vector<8x128xf32> -> vector<8x128xf32>
    %51 = arith.addf %49, %50 : vector<8x128xf32>
    %52 = math.tanh %51 : vector<8x128xf32>
    %c7_i32 = arith.constant 7 : i32
    %53 = arith.index_cast %c7_i32 : i32 to index
    %c0_33 = arith.constant 0 : index
    %c0_34 = arith.constant 0 : index
    %54 = vector.load %arg7[%53, %c0_33, %c0_34] : memref<8x8x128xf32, #tpu.memory_space<vmem>>, vector<1x8x128xf32>
    %55 = vector.shape_cast %54 : vector<1x8x128xf32> to vector<8x128xf32>
    %cst_35 = arith.constant dense<0.000000e+00> : vector<8x128xf32>
    %56 = tpu.matmul %52, %9, %cst_35 {dimension_numbers = #tpu.dot_dimension_numbers<[1], [0], [0], [1], [0, 0, 1, 1], [], []>} : vector<8x128xf32>, vector<128x128xf32>, vector<8x128xf32> -> vector<8x128xf32>
    %57 = arith.addf %55, %56 : vector<8x128xf32>
    %58 = math.tanh %57 : vector<8x128xf32>
    %c8_i32 = arith.constant 8 : i32
    %c0_36 = arith.constant 0 : index
    %c0_37 = arith.constant 0 : index
    %59 = vector.load %arg4[%c0_36, %c0_37] : memref<128x128xf32, #tpu.memory_space<vmem>>, vector<128x128xf32>
    %cst_38 = arith.constant dense<0.000000e+00> : vector<8x128xf32>
    %60 = tpu.matmul %58, %59, %cst_38 {dimension_numbers = #tpu.dot_dimension_numbers<[1], [0], [0], [1], [0, 0, 1, 1], [], []>} : vector<8x128xf32>, vector<128x128xf32>, vector<8x128xf32> -> vector<8x128xf32>
    %c0_39 = arith.constant 0 : index
    %c0_40 = arith.constant 0 : index
    %61 = vector.load %arg5[%c0_39, %c0_40] : memref<1x128xf32, #tpu.memory_space<vmem>>, vector<1x128xf32>
    %62 = vector.broadcast %61 : vector<1x128xf32> to vector<8x128xf32>
    %63 = arith.addf %60, %62 : vector<8x128xf32>
    %c0_41 = arith.constant 0 : index
    %c0_42 = arith.constant 0 : index
    %64 = vector.load %arg6[%c0_41, %c0_42] : memref<8x128xf32, #tpu.memory_space<vmem>>, vector<8x128xf32>
    tpu.vector_store %arg6[%c0_41, %c0_42], %63 {strides = array<i32>} : memref<8x128xf32, #tpu.memory_space<vmem>>, vector<8x128xf32>,
    return
  }
}

</mosaic_0001>

<llo_original>
// kernel: tpu_custom_call.1
$region0: #{tpu_custom_call.1}
  #allocation0 [shape = 'u32[]', space=smem, size = 0x4, offset = 0x4, fixed_abs, tag = 'smem constant byte address 0x4 - core index']
  #allocation1 [shape = 'u32[144,128]{1,0:T(1,128)}', space=vmem, size = 0x12000, scoped, tag = 'internal scratch']
  #allocation2 [shape = 'f32[8,8,128]{2,1,0:T(8,128)}', space=vmem, size = 0x8000, scoped, tag = 'scratch operand']
  %s0 = inlined_call_operand.hbm [shape: f32[8,8,16], index: 0, kind: input, shape index: {}]
  %s1 = inlined_call_operand.hbm [shape: f32[16,128], index: 1, kind: input, shape index: {}]
  %s2 = inlined_call_operand.hbm [shape: f32[128,128], index: 2, kind: input, shape index: {}]
  %s3 = inlined_call_operand.vmem [shape: f32[1,128], index: 3, kind: input, shape index: {}]
  %s4 = inlined_call_operand.hbm [shape: f32[128,128], index: 4, kind: input, shape index: {}]
  %s5 = inlined_call_operand.vmem [shape: f32[1,128], index: 5, kind: input, shape index: {}]
  %s6 = inlined_call_operand.hbm [shape: f32[8,128], index: 6, kind: output, shape index: {}]
  %s7 = sld [smem:[#allocation0]]
  $region50: #{tpu_custom_call.1} parent=0
    _
  %s9 = ssub.s32 1, %s7
  %s10 = scalar_select 0, %s9, %s7
  $region1: #{tpu_custom_call.1} parent=0
    #allocation3 [shape = 'u8[32768]{0}', space=vmem, size = 0x8000, scoped, tag = 'input window, operand 0, single buffered']
    #allocation4 [shape = 's32[1]{0}', space=sflag, size = 0x4, scoped, tag = 'scoped memory for tpu_custom_call.1']
    #allocation5 [shape = 's32[1]{0}', space=sflag, size = 0x4, scoped, tag = 'scoped memory for tpu_custom_call.1']
    #allocation6 [shape = 'u8[8192]{0}', space=vmem, size = 0x2000, scoped, tag = 'input window, operand 1, single buffered']
    #allocation7 [shape = 's32[1]{0}', space=sflag, size = 0x4, scoped, tag = 'scoped memory for tpu_custom_call.1']
    #allocation8 [shape = 'u8[65536]{0}', space=vmem, size = 0x10000, scoped, tag = 'input window, operand 2, single buffered']
    #allocation9 [shape = 'u8[65536]{0}', space=vmem, size = 0x10000, scoped, tag = 'input window, operand 4, single buffered']
    #allocation10 [shape = 's32[1]{0}', space=sflag, size = 0x4, scoped, tag = 'scoped memory for tpu_custom_call.1']
    #allocation11 [shape = 'u8[4096]{0}', space=vmem, size = 0x1000, scoped, tag = 'output window, operand 0, single buffered']
    %11 = vsyncpa [#allocation4], 0
    %12 = vsyncpa [#allocation7], 0
    %13 = vsyncpa [#allocation10], 0
    %14 = vsyncpa [#allocation5], 0
    // Predicated region
    $region2: #{tpu_custom_call.1} parent=1 // pred_check
      _
    $region3: #{tpu_custom_call.1} parent=1 // pred_check_branch
      %16 = sbr.rel (0) target = $region5
    $region4: #{tpu_custom_call.1} parent=1 // pred_region
      %s18 = ssub.s32 1024, 1024
      %19 = vsyncadd [#allocation4], %s18
      %s20 = sshll.u32 [#allocation3], 4
      %s21 = int_to_ptr.vmem [resolvable:$true] %s20
      %26 = dma.hbm_to_vmem [thread:$0]  %s0, 1024, %s21, [#allocation4], 128, 128, 8
    $region5: #{tpu_custom_call.1} parent=1 // pred_fallthru
      _
    // Predicated region
    $region6: #{tpu_custom_call.1} parent=1 // pred_check
      _
    $region7: #{tpu_custom_call.1} parent=1 // pred_check_branch
      %28 = sbr.rel (0) target = $region9
    $region8: #{tpu_custom_call.1} parent=1 // pred_region
      %s30 = ssub.s32 256, 256
      %31 = vsyncadd [#allocation7], %s30
      %s32 = sshll.u32 [#allocation6], 4
      %s33 = int_to_ptr.vmem [resolvable:$true] %s32
      %38 = dma.hbm_to_vmem [thread:$0]  %s1, 256, %s33, [#allocation7], 128, 128, 8
    $region9: #{tpu_custom_call.1} parent=1 // pred_fallthru
      _
    // Predicated region
    $region10: #{tpu_custom_call.1} parent=1 // pred_check
      _
    $region11: #{tpu_custom_call.1} parent=1 // pred_check_branch
      %40 = sbr.rel (0) target = $region13
    $region12: #{tpu_custom_call.1} parent=1 // pred_region
      %s42 = ssub.s32 2048, 2048
      %43 = vsyncadd [#allocation7], %s42
      %s44 = sshll.u32 [#allocation8], 4
      %s45 = int_to_ptr.vmem [resolvable:$true] %s44
      %50 = dma.hbm_to_vmem [thread:$0]  %s2, 2048, %s45, [#allocation7], 128, 128, 8
    $region13: #{tpu_custom_call.1} parent=1 // pred_fallthru
      _
    // Predicated region
    $region14: #{tpu_custom_call.1} parent=1 // pred_check
      _
    $region15: #{tpu_custom_call.1} parent=1 // pred_check_branch
      %52 = sbr.rel (0) target = $region17
    $region16: #{tpu_custom_call.1} parent=1 // pred_region
      _
    $region17: #{tpu_custom_call.1} parent=1 // pred_fallthru
      _
    // Predicated region
    $region18: #{tpu_custom_call.1} parent=1 // pred_check
      _
    $region19: #{tpu_custom_call.1} parent=1 // pred_check_branch
      %54 = sbr.rel (0) target = $region21
    $region20: #{tpu_custom_call.1} parent=1 // pred_region
      %s56 = ssub.s32 2048, 2048
      %57 = vsyncadd [#allocation10], %s56
      %s58 = sshll.u32 [#allocation9], 4
      %s59 = int_to_ptr.vmem [resolvable:$true] %s58
      %64 = dma.hbm_to_vmem [thread:$0]  %s4, 2048, %s59, [#allocation10], 128, 128, 8
    $region21: #{tpu_custom_call.1} parent=1 // pred_fallthru
      _
    // Predicated region
    $region22: #{tpu_custom_call.1} parent=1 // pred_check
      _
    $region23: #{tpu_custom_call.1} parent=1 // pred_check_branch
      %66 = sbr.rel (0) target = $region25
    $region24: #{tpu_custom_call.1} parent=1 // pred_region
      _
    $region25: #{tpu_custom_call.1} parent=1 // pred_fallthru
      _
    // Predicated region
    $region26: #{tpu_custom_call.1} parent=1 // pred_check
      _
    $region27: #{tpu_custom_call.1} parent=1 // pred_check_branch
      %68 = sbr.rel (0) target = $region29
    $region28: #{tpu_custom_call.1} parent=1 // pred_region
      %69 = dma.done [#allocation4], 1024
    $region29: #{tpu_custom_call.1} parent=1 // pred_fallthru
      _
    // Predicated region
    $region30: #{tpu_custom_call.1} parent=1 // pred_check
      _
    $region31: #{tpu_custom_call.1} parent=1 // pred_check_branch
      %71 = sbr.rel (0) target = $region33
    $region32: #{tpu_custom_call.1} parent=1 // pred_region
      %72 = dma.done [#allocation7], 256
    $region33: #{tpu_custom_call.1} parent=1 // pred_fallthru
      _
    // Predicated region
    $region34: #{tpu_custom_call.1} parent=1 // pred_check
      _
    $region35: #{tpu_custom_call.1} parent=1 // pred_check_branch
      %74 = sbr.rel (0) target = $region37
    $region36: #{tpu_custom_call.1} parent=1 // pred_region
      %75 = dma.done [#allocation7], 2048
    $region37: #{tpu_custom_call.1} parent=1 // pred_fallthru
      _
    // Predicated region
    $region38: #{tpu_custom_call.1} parent=1 // pred_check
      _
    $region39: #{tpu_custom_call.1} parent=1 // pred_check_branch
      %77 = sbr.rel (0) target = $region41
    $region40: #{tpu_custom_call.1} parent=1 // pred_region
      %78 = dma.done [#allocation10], 2048
    $region41: #{tpu_custom_call.1} parent=1 // pred_fallthru
      _
    %v79 = vld [vmem:[#allocation3] sm:$0xff]
    %v80 = vld [vmem:[#allocation3 + $0x8] sm:$0xff]
    %v81 = vld [vmem:[#allocation3 + $0x10] sm:$0xff]
    %v82 = vld [vmem:[#allocation3 + $0x18] sm:$0xff]
    %v83 = vld [vmem:[#allocation3 + $0x20] sm:$0xff]
    %v84 = vld [vmem:[#allocation3 + $0x28] sm:$0xff]
    %v85 = vld [vmem:[#allocation3 + $0x30] sm:$0xff]
    %v86 = vld [vmem:[#allocation3 + $0x38] sm:$0xff]
    %v87 = vld [vmem:[#allocation6] sm:$0xff]
    %v88 = vld [vmem:[#allocation6 + $0x8] sm:$0xff]
    %v89 = vld [vmem:[%s3] sm:$0x1]
    %v91 = vlaneseq
    %v92 = vshrl.u32 %v91, 7
    %v93 = vsub.s32 0, %v92
    %v94 = vrot.slane %v89, %v93
    %vm96 = vcmask 130048
    %v98 = vsel %vm96, %v79, 0
    %v101 = vsel %vm96, %v80, 0
    %v104 = vsel %vm96, %v81, 0
    %v107 = vsel %vm96, %v82, 0
    %v110 = vsel %vm96, %v83, 0
    %v113 = vsel %vm96, %v84, 0
    %v116 = vsel %vm96, %v85, 0
    %v119 = vsel %vm96, %v86, 0
    %121 = vmatprep.subr.mxu0 0.0
    %122 = vmatpush1.msra.mxu0 %v87
    %123 = vmatprep.subr.mxu0 0.0
    %124 = vmatpush1.msra.mxu0 %v88
    %125 = vmatprep.subr.mxu0 0.0
    %126 = vmatpush1.msra.mxu0 0.0
    %127 = vmatprep.subr.mxu0 0.0
    %128 = vmatpush1.msra.mxu0 0.0
    %129 = vmatprep.subr.mxu0 0.0
    %130 = vmatpush1.msra.mxu0 0.0
    %131 = vmatprep.subr.mxu0 0.0
    %132 = vmatpush1.msra.mxu0 0.0
    %133 = vmatprep.subr.mxu0 0.0
    %134 = vmatpush1.msra.mxu0 0.0
    %135 = vmatprep.subr.mxu0 0.0
    %136 = vmatpush1.msra.mxu0 0.0
    %137 = vmatprep.subr.mxu0 0.0
    %138 = vmatpush1.msra.mxu0 0.0
    %139 = vmatprep.subr.mxu0 0.0
    %140 = vmatpush1.msra.mxu0 0.0
    %141 = vmatprep.subr.mxu0 0.0
    %142 = vmatpush1.msra.mxu0 0.0
    %143 = vmatprep.subr.mxu0 0.0
    %144 = vmatpush1.msra.mxu0 0.0
    %145 = vmatprep.subr.mxu0 0.0
    %146 = vmatpush1.msra.mxu0 0.0
    %147 = vmatprep.subr.mxu0 0.0
    %148 = vmatpush1.msra.mxu0 0.0
    %149 = vmatprep.subr.mxu0 0.0
    %150 = vmatpush1.msra.mxu0 0.0
    %151 = vmatprep.subr.mxu0 0.0
    %152 = vmatpush1.msra.mxu0 0.0
    %153 = vmatprep.subr.mxu0 0.0
    %154 = vmatpush1.msra.mxu0 0.0
    %155 = vmatprep.subr.mxu0 0.0
    %156 = vmatpush1.msra.mxu0 0.0
    %157 = vmatprep.subr.mxu0 0.0
    %158 = vmatpush1.msra.mxu0 0.0
    %159 = vmatprep.subr.mxu0 0.0
    %160 = vmatpush1.msra.mxu0 0.0
    %161 = vmatprep.subr.mxu0 0.0
    %162 = vmatpush1.msra.mxu0 0.0
    %163 = vmatprep.subr.mxu0 0.0
    %164 = vmatpush1.msra.mxu0 0.0
    %165 = vmatprep.subr.mxu0 0.0
    %166 = vmatpush1.msra.mxu0 0.0
    %167 = vmatprep.subr.mxu0 0.0
    %168 = vmatpush1.msra.mxu0 0.0
    %169 = vmatprep.subr.mxu0 0.0
    %170 = vmatpush1.msra.mxu0 0.0
    %171 = vmatprep.subr.mxu0 0.0
    %172 = vmatpush1.msra.mxu0 0.0
    %173 = vmatprep.subr.mxu0 0.0
    %174 = vmatpush1.msra.mxu0 0.0
    %175 = vmatprep.subr.mxu0 0.0
    %176 = vmatpush1.msra.mxu0 0.0
    %177 = vmatprep.subr.mxu0 0.0
    %178 = vmatpush1.msra.mxu0 0.0
    %179 = vmatprep.subr.mxu0 0.0
    %180 = vmatpush1.msra.mxu0 0.0
    %181 = vmatprep.subr.mxu0 0.0
    %182 = vmatpush1.msra.mxu0 0.0
    %183 = vmatprep.subr.mxu0 0.0
    %184 = vmatpush1.msra.mxu0 0.0
    %185 = vmatprep.mubr.f32.mxu0 0.0
    %186 = vmatmul.mubr.f32.gmra.mrb[0].mxu0 %v98
    %v187 = vpop.f32.mrb[0].mxu0
    %v188 = vadd.f32 %v94, %v187
    %v189 = vpop.f32.mrb[0].mxu0
    %190 = vmatprep.mubr.f32.mxu0 0.0
    %191 = vmatmul.mubr.f32.gmra.mrb[0].mxu0 %v101
    %v192 = vpop.f32.mrb[0].mxu0
    %v193 = vadd.f32 %v94, %v192
    %v194 = vpop.f32.mrb[0].mxu0
    %195 = vmatprep.mubr.f32.mxu0 0.0
    %196 = vmatmul.mubr.f32.gmra.mrb[0].mxu0 %v104
    %v197 = vpop.f32.mrb[0].mxu0
    %v198 = vadd.f32 %v94, %v197
    %v199 = vpop.f32.mrb[0].mxu0
    %200 = vmatprep.mubr.f32.mxu0 0.0
    %201 = vmatmul.mubr.f32.gmra.mrb[0].mxu0 %v107
    %v202 = vpop.f32.mrb[0].mxu0
    %v203 = vadd.f32 %v94, %v202
    %v204 = vpop.f32.mrb[0].mxu0
    %205 = vmatprep.mubr.f32.mxu0 0.0
    %206 = vmatmul.mubr.f32.gmra.mrb[0].mxu0 %v110
    %v207 = vpop.f32.mrb[0].mxu0
    %v208 = vadd.f32 %v94, %v207
    %v209 = vpop.f32.mrb[0].mxu0
    %210 = vmatprep.mubr.f32.mxu0 0.0
    %211 = vmatmul.mubr.f32.gmra.mrb[0].mxu0 %v113
    %v212 = vpop.f32.mrb[0].mxu0
    %v213 = vadd.f32 %v94, %v212
    %v214 = vpop.f32.mrb[0].mxu0
    %215 = vmatprep.mubr.f32.mxu0 0.0
    %216 = vmatmul.mubr.f32.gmra.mrb[0].mxu0 %v116
    %v217 = vpop.f32.mrb[0].mxu0
    %v218 = vadd.f32 %v94, %v217
    %v219 = vpop.f32.mrb[0].mxu0
    %220 = vmatprep.mubr.f32.mxu0 0.0
    %221 = vmatmul.mubr.f32.gmra.mrb[0].mxu0 %v119
    %v222 = vpop.f32.mrb[0].mxu0
    %v223 = vadd.f32 %v94, %v222
    %v224 = vpop.f32.mrb[0].mxu0
    %225 = vdwg.mxu0
    %226 = vst [vmem:[#allocation2] sm:$0xff] %v188
    %227 = vst [vmem:[#allocation2 + $0x8] sm:$0xff] %v193
    %228 = vst [vmem:[#allocation2 + $0x10] sm:$0xff] %v198
    %229 = vst [vmem:[#allocation2 + $0x18] sm:$0xff] %v203
    %230 = vst [vmem:[#allocation2 + $0x20] sm:$0xff] %v208
    %231 = vst [vmem:[#allocation2 + $0x28] sm:$0xff] %v213
    %232 = vst [vmem:[#allocation2 + $0x30] sm:$0xff] %v218
    %233 = vst [vmem:[#allocation2 + $0x38] sm:$0xff] %v223
    %v234 = vld [vmem:[#allocation8] sm:$0xff]
    %v235 = vld [vmem:[#allocation8 + $0x8] sm:$0xff]
    %v236 = vld [vmem:[#allocation8 + $0x10] sm:$0xff]
    %v237 = vld [vmem:[#allocation8 + $0x18] sm:$0xff]
    %v238 = vld [vmem:[#allocation8 + $0x20] sm:$0xff]
    %v239 = vld [vmem:[#allocation8 + $0x28] sm:$0xff]
    %v240 = vld [vmem:[#allocation8 + $0x30] sm:$0xff]
    %v241 = vld [vmem:[#allocation8 + $0x38] sm:$0xff]
    %v242 = vld [vmem:[#allocation8 + $0x40] sm:$0xff]
    %v243 = vld [vmem:[#allocation8 + $0x48] sm:$0xff]
    %v244 = vld [vmem:[#allocation8 + $0x50] sm:$0xff]
    %v245 = vld [vmem:[#allocation8 + $0x58] sm:$0xff]
    %v246 = vld [vmem:[#allocation8 + $0x60] sm:$0xff]
    %v247 = vld [vmem:[#allocation8 + $0x68] sm:$0xff]
    %v248 = vld [vmem:[#allocation8 + $0x70] sm:$0xff]
    %v249 = vld [vmem:[#allocation8 + $0x78] sm:$0xff]
    %v250 = vld [vmem:[#allocation2] sm:$0xff]
    %251 = vmatprep.subr.mxu0 0.0
    %252 = vmatpush1.msra.mxu0 %v234
    %253 = vmatprep.subr.mxu0 0.0
    %254 = vmatpush1.msra.mxu0 %v235
    %255 = vmatprep.subr.mxu0 0.0
    %256 = vmatpush1.msra.mxu0 %v236
    %257 = vmatprep.subr.mxu0 0.0
    %258 = vmatpush1.msra.mxu0 %v237
    %259 = vmatprep.subr.mxu0 0.0
    %260 = vmatpush1.msra.mxu0 %v238
    %261 = vmatprep.subr.mxu0 0.0
    %262 = vmatpush1.msra.mxu0 %v239
    %263 = vmatprep.subr.mxu0 0.0
    %264 = vmatpush1.msra.mxu0 %v240
    %265 = vmatprep.subr.mxu0 0.0
    %266 = vmatpush1.msra.mxu0 %v241
    %267 = vmatprep.subr.mxu0 0.0
    %268 = vmatpush1.msra.mxu0 %v242
    %269 = vmatprep.subr.mxu0 0.0
    %270 = vmatpush1.msra.mxu0 %v243
    %271 = vmatprep.subr.mxu0 0.0
    %272 = vmatpush1.msra.mxu0 %v244
    %273 = vmatprep.subr.mxu0 0.0
    %274 = vmatpush1.msra.mxu0 %v245
    %275 = vmatprep.subr.mxu0 0.0
    %276 = vmatpush1.msra.mxu0 %v246
    %277 = vmatprep.subr.mxu0 0.0
    %278 = vmatpush1.msra.mxu0 %v247
    %279 = vmatprep.subr.mxu0 0.0
    %280 = vmatpush1.msra.mxu0 %v248
    %281 = vmatprep.subr.mxu0 0.0
    %282 = vmatpush1.msra.mxu0 %v249
    %283 = vmatprep.subr.mxu0 0.0
    %284 = vmatpush1.msra.mxu0 0.0
    %285 = vmatprep.subr.mxu0 0.0
    %286 = vmatpush1.msra.mxu0 0.0
    %287 = vmatprep.subr.mxu0 0.0
    %288 = vmatpush1.msra.mxu0 0.0
    %289 = vmatprep.subr.mxu0 0.0
    %290 = vmatpush1.msra.mxu0 0.0
    %291 = vmatprep.subr.mxu0 0.0
    %292 = vmatpush1.msra.mxu0 0.0
    %293 = vmatprep.subr.mxu0 0.0
    %294 = vmatpush1.msra.mxu0 0.0
    %295 = vmatprep.subr.mxu0 0.0
    %296 = vmatpush1.msra.mxu0 0.0
    %297 = vmatprep.subr.mxu0 0.0
    %298 = vmatpush1.msra.mxu0 0.0
    %299 = vmatprep.subr.mxu0 0.0
    %300 = vmatpush1.msra.mxu0 0.0
    %301 = vmatprep.subr.mxu0 0.0
    %302 = vmatpush1.msra.mxu0 0.0
    %303 = vmatprep.subr.mxu0 0.0
    %304 = vmatpush1.msra.mxu0 0.0
    %305 = vmatprep.subr.mxu0 0.0
    %306 = vmatpush1.msra.mxu0 0.0
    %307 = vmatprep.subr.mxu0 0.0
    %308 = vmatpush1.msra.mxu0 0.0
    %309 = vmatprep.subr.mxu0 0.0
    %310 = vmatpush1.msra.mxu0 0.0
    %311 = vmatprep.subr.mxu0 0.0
    %312 = vmatpush1.msra.mxu0 0.0
    %313 = vmatprep.subr.mxu0 0.0
    %314 = vmatpush1.msra.mxu0 0.0
    %315 = vmatprep.mubr.f32.mxu0 0.0
    %316 = vmatmul.mubr.f32.gmra.mrb[0].mxu0 0.0
    %v317 = vpop.f32.mrb[0].mxu0
    %v318 = vadd.f32 0.0, %v317
    %v319 = vpop.f32.mrb[0].mxu0
    %320 = vdwg.mxu0
    %v321 = vadd.f32 %v250, %v318
    %v322 = vtanh.pop %v321
    %s323 = scalar_lea.vmem [#allocation2], 8
    %v324 = vld [vmem:[%s323] sm:$0xff]
    %325 = vmatprep.subr.mxu0 0.0
    %326 = vmatpush1.msra.mxu0 %v234
    %327 = vmatprep.subr.mxu0 0.0
    %328 = vmatpush1.msra.mxu0 %v235
    %329 = vmatprep.subr.mxu0 0.0
    %330 = vmatpush1.msra.mxu0 %v236
    %331 = vmatprep.subr.mxu0 0.0
    %332 = vmatpush1.msra.mxu0 %v237
    %333 = vmatprep.subr.mxu0 0.0
    %334 = vmatpush1.msra.mxu0 %v238
    %335 = vmatprep.subr.mxu0 0.0
    %336 = vmatpush1.msra.mxu0 %v239
    %337 = vmatprep.subr.mxu0 0.0
    %338 = vmatpush1.msra.mxu0 %v240
    %339 = vmatprep.subr.mxu0 0.0
    %340 = vmatpush1.msra.mxu0 %v241
    %341 = vmatprep.subr.mxu0 0.0
    %342 = vmatpush1.msra.mxu0 %v242
    %343 = vmatprep.subr.mxu0 0.0
    %344 = vmatpush1.msra.mxu0 %v243
    %345 = vmatprep.subr.mxu0 0.0
    %346 = vmatpush1.msra.mxu0 %v244
    %347 = vmatprep.subr.mxu0 0.0
    %348 = vmatpush1.msra.mxu0 %v245
    %349 = vmatprep.subr.mxu0 0.0
    %350 = vmatpush1.msra.mxu0 %v246
    %351 = vmatprep.subr.mxu0 0.0
    %352 = vmatpush1.msra.mxu0 %v247
    %353 = vmatprep.subr.mxu0 0.0
    %354 = vmatpush1.msra.mxu0 %v248
    %355 = vmatprep.subr.mxu0 0.0
    %356 = vmatpush1.msra.mxu0 %v249
    %357 = vmatprep.subr.mxu0 0.0
    %358 = vmatpush1.msra.mxu0 0.0
    %359 = vmatprep.subr.mxu0 0.0
    %360 = vmatpush1.msra.mxu0 0.0
    %361 = vmatprep.subr.mxu0 0.0
    %362 = vmatpush1.msra.mxu0 0.0
    %363 = vmatprep.subr.mxu0 0.0
    %364 = vmatpush1.msra.mxu0 0.0
    %365 = vmatprep.subr.mxu0 0.0
    %366 = vmatpush1.msra.mxu0 0.0
    %367 = vmatprep.subr.mxu0 0.0
    %368 = vmatpush1.msra.mxu0 0.0
    %369 = vmatprep.subr.mxu0 0.0
    %370 = vmatpush1.msra.mxu0 0.0
    %371 = vmatprep.subr.mxu0 0.0
    %372 = vmatpush1.msra.mxu0 0.0
    %373 = vmatprep.subr.mxu0 0.0
    %374 = vmatpush1.msra.mxu0 0.0
    %375 = vmatprep.subr.mxu0 0.0
    %376 = vmatpush1.msra.mxu0 0.0
    %377 = vmatprep.subr.mxu0 0.0
    %378 = vmatpush1.msra.mxu0 0.0
    %379 = vmatprep.subr.mxu0 0.0
    %380 = vmatpush1.msra.mxu0 0.0
    %381 = vmatprep.subr.mxu0 0.0
    %382 = vmatpush1.msra.mxu0 0.0
    %383 = vmatprep.subr.mxu0 0.0
    %384 = vmatpush1.msra.mxu0 0.0
    %385 = vmatprep.subr.mxu0 0.0
    %386 = vmatpush1.msra.mxu0 0.0
    %387 = vmatprep.subr.mxu0 0.0
    %388 = vmatpush1.msra.mxu0 0.0
    %389 = vmatprep.mubr.f32.mxu0 0.0
    %390 = vmatmul.mubr.f32.gmra.mrb[0].mxu0 %v322
    %v391 = vpop.f32.mrb[0].mxu0
    %v392 = vadd.f32 0.0, %v391
    %v393 = vpop.f32.mrb[0].mxu0
    %394 = vdwg.mxu0
    %v395 = vadd.f32 %v324, %v392
    %v396 = vtanh.pop %v395
    %s397 = scalar_lea.vmem [#allocation2], 16
    %v398 = vld [vmem:[%s397] sm:$0xff]
    %399 = vmatprep.subr.mxu0 0.0
    %400 = vmatpush1.msra.mxu0 %v234
    %401 = vmatprep.subr.mxu0 0.0
    %402 = vmatpush1.msra.mxu0 %v235
    %403 = vmatprep.subr.mxu0 0.0
    %404 = vmatpush1.msra.mxu0 %v236
    %405 = vmatprep.subr.mxu0 0.0
    %406 = vmatpush1.msra.mxu0 %v237
    %407 = vmatprep.subr.mxu0 0.0
    %408 = vmatpush1.msra.mxu0 %v238
    %409 = vmatprep.subr.mxu0 0.0
    %410 = vmatpush1.msra.mxu0 %v239
    %411 = vmatprep.subr.mxu0 0.0
    %412 = vmatpush1.msra.mxu0 %v240
    %413 = vmatprep.subr.mxu0 0.0
    %414 = vmatpush1.msra.mxu0 %v241
    %415 = vmatprep.subr.mxu0 0.0
    %416 = vmatpush1.msra.mxu0 %v242
    %417 = vmatprep.subr.mxu0 0.0
    %418 = vmatpush1.msra.mxu0 %v243
    %419 = vmatprep.subr.mxu0 0.0
    %420 = vmatpush1.msra.mxu0 %v244
    %421 = vmatprep.subr.mxu0 0.0
    %422 = vmatpush1.msra.mxu0 %v245
    %423 = vmatprep.subr.mxu0 0.0
    %424 = vmatpush1.msra.mxu0 %v246
    %425 = vmatprep.subr.mxu0 0.0
    %426 = vmatpush1.msra.mxu0 %v247
    %427 = vmatprep.subr.mxu0 0.0
    %428 = vmatpush1.msra.mxu0 %v248
    %429 = vmatprep.subr.mxu0 0.0
    %430 = vmatpush1.msra.mxu0 %v249
    %431 = vmatprep.subr.mxu0 0.0
    %432 = vmatpush1.msra.mxu0 0.0
    %433 = vmatprep.subr.mxu0 0.0
    %434 = vmatpush1.msra.mxu0 0.0
    %435 = vmatprep.subr.mxu0 0.0
    %436 = vmatpush1.msra.mxu0 0.0
    %437 = vmatprep.subr.mxu0 0.0
    %438 = vmatpush1.msra.mxu0 0.0
    %439 = vmatprep.subr.mxu0 0.0
    %440 = vmatpush1.msra.mxu0 0.0
    %441 = vmatprep.subr.mxu0 0.0
    %442 = vmatpush1.msra.mxu0 0.0
    %443 = vmatprep.subr.mxu0 0.0
    %444 = vmatpush1.msra.mxu0 0.0
    %445 = vmatprep.subr.mxu0 0.0
    %446 = vmatpush1.msra.mxu0 0.0
    %447 = vmatprep.subr.mxu0 0.0
    %448 = vmatpush1.msra.mxu0 0.0
    %449 = vmatprep.subr.mxu0 0.0
    %450 = vmatpush1.msra.mxu0 0.0
    %451 = vmatprep.subr.mxu0 0.0
    %452 = vmatpush1.msra.mxu0 0.0
    %453 = vmatprep.subr.mxu0 0.0
    %454 = vmatpush1.msra.mxu0 0.0
    %455 = vmatprep.subr.mxu0 0.0
    %456 = vmatpush1.msra.mxu0 0.0
    %457 = vmatprep.subr.mxu0 0.0
    %458 = vmatpush1.msra.mxu0 0.0
    %459 = vmatprep.subr.mxu0 0.0
    %460 = vmatpush1.msra.mxu0 0.0
    %461 = vmatprep.subr.mxu0 0.0
    %462 = vmatpush1.msra.mxu0 0.0
    %463 = vmatprep.mubr.f32.mxu0 0.0
    %464 = vmatmul.mubr.f32.gmra.mrb[0].mxu0 %v396
    %v465 = vpop.f32.mrb[0].mxu0
    %v466 = vadd.f32 0.0, %v465
    %v467 = vpop.f32.mrb[0].mxu0
    %468 = vdwg.mxu0
    %v469 = vadd.f32 %v398, %v466
    %v470 = vtanh.pop %v469
    %s471 = scalar_lea.vmem [#allocation2], 24
    %v472 = vld [vmem:[%s471] sm:$0xff]
    %473 = vmatprep.subr.mxu0 0.0
    %474 = vmatpush1.msra.mxu0 %v234
    %475 = vmatprep.subr.mxu0 0.0
    %476 = vmatpush1.msra.mxu0 %v235
    %477 = vmatprep.subr.mxu0 0.0
    %478 = vmatpush1.msra.mxu0 %v236
    %479 = vmatprep.subr.mxu0 0.0
    %480 = vmatpush1.msra.mxu0 %v237
    %481 = vmatprep.subr.mxu0 0.0
    %482 = vmatpush1.msra.mxu0 %v238
    %483 = vmatprep.subr.mxu0 0.0
    %484 = vmatpush1.msra.mxu0 %v239
    %485 = vmatprep.subr.mxu0 0.0
    %486 = vmatpush1.msra.mxu0 %v240
    %487 = vmatprep.subr.mxu0 0.0
    %488 = vmatpush1.msra.mxu0 %v241
    %489 = vmatprep.subr.mxu0 0.0
    %490 = vmatpush1.msra.mxu0 %v242
    %491 = vmatprep.subr.mxu0 0.0
    %492 = vmatpush1.msra.mxu0 %v243
    %493 = vmatprep.subr.mxu0 0.0
    %494 = vmatpush1.msra.mxu0 %v244
    %495 = vmatprep.subr.mxu0 0.0
    %496 = vmatpush1.msra.mxu0 %v245
    %497 = vmatprep.subr.mxu0 0.0
    %498 = vmatpush1.msra.mxu0 %v246
    %499 = vmatprep.subr.mxu0 0.0
    %500 = vmatpush1.msra.mxu0 %v247
    %501 = vmatprep.subr.mxu0 0.0
    %502 = vmatpush1.msra.mxu0 %v248
    %503 = vmatprep.subr.mxu0 0.0
    %504 = vmatpush1.msra.mxu0 %v249
    %505 = vmatprep.subr.mxu0 0.0
    %506 = vmatpush1.msra.mxu0 0.0
    %507 = vmatprep.subr.mxu0 0.0
    %508 = vmatpush1.msra.mxu0 0.0
    %509 = vmatprep.subr.mxu0 0.0
    %510 = vmatpush1.msra.mxu0 0.0
    %511 = vmatprep.subr.mxu0 0.0
    %512 = vmatpush1.msra.mxu0 0.0
    %513 = vmatprep.subr.mxu0 0.0
    %514 = vmatpush1.msra.mxu0 0.0
    %515 = vmatprep.subr.mxu0 0.0
    %516 = vmatpush1.msra.mxu0 0.0
    %517 = vmatprep.subr.mxu0 0.0
    %518 = vmatpush1.msra.mxu0 0.0
    %519 = vmatprep.subr.mxu0 0.0
    %520 = vmatpush1.msra.mxu0 0.0
    %521 = vmatprep.subr.mxu0 0.0
    %522 = vmatpush1.msra.mxu0 0.0
    %523 = vmatprep.subr.mxu0 0.0
    %524 = vmatpush1.msra.mxu0 0.0
    %525 = vmatprep.subr.mxu0 0.0
    %526 = vmatpush1.msra.mxu0 0.0
    %527 = vmatprep.subr.mxu0 0.0
    %528 = vmatpush1.msra.mxu0 0.0
    %529 = vmatprep.subr.mxu0 0.0
    %530 = vmatpush1.msra.mxu0 0.0
    %531 = vmatprep.subr.mxu0 0.0
    %532 = vmatpush1.msra.mxu0 0.0
    %533 = vmatprep.subr.mxu0 0.0
    %534 = vmatpush1.msra.mxu0 0.0
    %535 = vmatprep.subr.mxu0 0.0
    %536 = vmatpush1.msra.mxu0 0.0
    %537 = vmatprep.mubr.f32.mxu0 0.0
    %538 = vmatmul.mubr.f32.gmra.mrb[0].mxu0 %v470
    %v539 = vpop.f32.mrb[0].mxu0
    %v540 = vadd.f32 0.0, %v539
    %v541 = vpop.f32.mrb[0].mxu0
    %542 = vdwg.mxu0
    %v543 = vadd.f32 %v472, %v540
    %v544 = vtanh.pop %v543
    %s545 = scalar_lea.vmem [#allocation2], 32
    %v546 = vld [vmem:[%s545] sm:$0xff]
    %547 = vmatprep.subr.mxu0 0.0
    %548 = vmatpush1.msra.mxu0 %v234
    %549 = vmatprep.subr.mxu0 0.0
    %550 = vmatpush1.msra.mxu0 %v235
    %551 = vmatprep.subr.mxu0 0.0
    %552 = vmatpush1.msra.mxu0 %v236
    %553 = vmatprep.subr.mxu0 0.0
    %554 = vmatpush1.msra.mxu0 %v237
    %555 = vmatprep.subr.mxu0 0.0
    %556 = vmatpush1.msra.mxu0 %v238
    %557 = vmatprep.subr.mxu0 0.0
    %558 = vmatpush1.msra.mxu0 %v239
    %559 = vmatprep.subr.mxu0 0.0
    %560 = vmatpush1.msra.mxu0 %v240
    %561 = vmatprep.subr.mxu0 0.0
    %562 = vmatpush1.msra.mxu0 %v241
    %563 = vmatprep.subr.mxu0 0.0
    %564 = vmatpush1.msra.mxu0 %v242
    %565 = vmatprep.subr.mxu0 0.0
    %566 = vmatpush1.msra.mxu0 %v243
    %567 = vmatprep.subr.mxu0 0.0
    %568 = vmatpush1.msra.mxu0 %v244
    %569 = vmatprep.subr.mxu0 0.0
    %570 = vmatpush1.msra.mxu0 %v245
    %571 = vmatprep.subr.mxu0 0.0
    %572 = vmatpush1.msra.mxu0 %v246
    %573 = vmatprep.subr.mxu0 0.0
    %574 = vmatpush1.msra.mxu0 %v247
    %575 = vmatprep.subr.mxu0 0.0
    %576 = vmatpush1.msra.mxu0 %v248
    %577 = vmatprep.subr.mxu0 0.0
    %578 = vmatpush1.msra.mxu0 %v249
    %579 = vmatprep.subr.mxu0 0.0
    %580 = vmatpush1.msra.mxu0 0.0
    %581 = vmatprep.subr.mxu0 0.0
    %582 = vmatpush1.msra.mxu0 0.0
    %583 = vmatprep.subr.mxu0 0.0
    %584 = vmatpush1.msra.mxu0 0.0
    %585 = vmatprep.subr.mxu0 0.0
    %586 = vmatpush1.msra.mxu0 0.0
    %587 = vmatprep.subr.mxu0 0.0
    %588 = vmatpush1.msra.mxu0 0.0
    %589 = vmatprep.subr.mxu0 0.0
    %590 = vmatpush1.msra.mxu0 0.0
    %591 = vmatprep.subr.mxu0 0.0
    %592 = vmatpush1.msra.mxu0 0.0
    %593 = vmatprep.subr.mxu0 0.0
    %594 = vmatpush1.msra.mxu0 0.0
    %595 = vmatprep.subr.mxu0 0.0
    %596 = vmatpush1.msra.mxu0 0.0
    %597 = vmatprep.subr.mxu0 0.0
    %598 = vmatpush1.msra.mxu0 0.0
    %599 = vmatprep.subr.mxu0 0.0
    %600 = vmatpush1.msra.mxu0 0.0
    %601 = vmatprep.subr.mxu0 0.0
    %602 = vmatpush1.msra.mxu0 0.0
    %603 = vmatprep.subr.mxu0 0.0
    %604 = vmatpush1.msra.mxu0 0.0
    %605 = vmatprep.subr.mxu0 0.0
    %606 = vmatpush1.msra.mxu0 0.0
    %607 = vmatprep.subr.mxu0 0.0
    %608 = vmatpush1.msra.mxu0 0.0
    %609 = vmatprep.subr.mxu0 0.0
    %610 = vmatpush1.msra.mxu0 0.0
    %611 = vmatprep.mubr.f32.mxu0 0.0
    %612 = vmatmul.mubr.f32.gmra.mrb[0].mxu0 %v544
    %v613 = vpop.f32.mrb[0].mxu0
    %v614 = vadd.f32 0.0, %v613
    %v615 = vpop.f32.mrb[0].mxu0
    %616 = vdwg.mxu0
    %v617 = vadd.f32 %v546, %v614
    %v618 = vtanh.pop %v617
    %s619 = scalar_lea.vmem [#allocation2], 40
    %v620 = vld [vmem:[%s619] sm:$0xff]
    %621 = vmatprep.subr.mxu0 0.0
    %622 = vmatpush1.msra.mxu0 %v234
    %623 = vmatprep.subr.mxu0 0.0
    %624 = vmatpush1.msra.mxu0 %v235
    %625 = vmatprep.subr.mxu0 0.0
    %626 = vmatpush1.msra.mxu0 %v236
    %627 = vmatprep.subr.mxu0 0.0
    %628 = vmatpush1.msra.mxu0 %v237
    %629 = vmatprep.subr.mxu0 0.0
    %630 = vmatpush1.msra.mxu0 %v238
    %631 = vmatprep.subr.mxu0 0.0
    %632 = vmatpush1.msra.mxu0 %v239
    %633 = vmatprep.subr.mxu0 0.0
    %634 = vmatpush1.msra.mxu0 %v240
    %635 = vmatprep.subr.mxu0 0.0
    %636 = vmatpush1.msra.mxu0 %v241
    %637 = vmatprep.subr.mxu0 0.0
    %638 = vmatpush1.msra.mxu0 %v242
    %639 = vmatprep.subr.mxu0 0.0
    %640 = vmatpush1.msra.mxu0 %v243
    %641 = vmatprep.subr.mxu0 0.0
    %642 = vmatpush1.msra.mxu0 %v244
    %643 = vmatprep.subr.mxu0 0.0
    %644 = vmatpush1.msra.mxu0 %v245
    %645 = vmatprep.subr.mxu0 0.0
    %646 = vmatpush1.msra.mxu0 %v246
    %647 = vmatprep.subr.mxu0 0.0
    %648 = vmatpush1.msra.mxu0 %v247
    %649 = vmatprep.subr.mxu0 0.0
    %650 = vmatpush1.msra.mxu0 %v248
    %651 = vmatprep.subr.mxu0 0.0
    %652 = vmatpush1.msra.mxu0 %v249
    %653 = vmatprep.subr.mxu0 0.0
    %654 = vmatpush1.msra.mxu0 0.0
    %655 = vmatprep.subr.mxu0 0.0
    %656 = vmatpush1.msra.mxu0 0.0
    %657 = vmatprep.subr.mxu0 0.0
    %658 = vmatpush1.msra.mxu0 0.0
    %659 = vmatprep.subr.mxu0 0.0
    %660 = vmatpush1.msra.mxu0 0.0
    %661 = vmatprep.subr.mxu0 0.0
    %662 = vmatpush1.msra.mxu0 0.0
    %663 = vmatprep.subr.mxu0 0.0
    %664 = vmatpush1.msra.mxu0 0.0
    %665 = vmatprep.subr.mxu0 0.0
    %666 = vmatpush1.msra.mxu0 0.0
    %667 = vmatprep.subr.mxu0 0.0
    %668 = vmatpush1.msra.mxu0 0.0
    %669 = vmatprep.subr.mxu0 0.0
    %670 = vmatpush1.msra.mxu0 0.0
    %671 = vmatprep.subr.mxu0 0.0
    %672 = vmatpush1.msra.mxu0 0.0
    %673 = vmatprep.subr.mxu0 0.0
    %674 = vmatpush1.msra.mxu0 0.0
    %675 = vmatprep.subr.mxu0 0.0
    %676 = vmatpush1.msra.mxu0 0.0
    %677 = vmatprep.subr.mxu0 0.0
    %678 = vmatpush1.msra.mxu0 0.0
    %679 = vmatprep.subr.mxu0 0.0
    %680 = vmatpush1.msra.mxu0 0.0
    %681 = vmatprep.subr.mxu0 0.0
    %682 = vmatpush1.msra.mxu0 0.0
    %683 = vmatprep.subr.mxu0 0.0
    %684 = vmatpush1.msra.mxu0 0.0
    %685 = vmatprep.mubr.f32.mxu0 0.0
    %686 = vmatmul.mubr.f32.gmra.mrb[0].mxu0 %v618
    %v687 = vpop.f32.mrb[0].mxu0
    %v688 = vadd.f32 0.0, %v687
    %v689 = vpop.f32.mrb[0].mxu0
    %690 = vdwg.mxu0
    %v691 = vadd.f32 %v620, %v688
    %v692 = vtanh.pop %v691
    %s693 = scalar_lea.vmem [#allocation2], 48
    %v694 = vld [vmem:[%s693] sm:$0xff]
    %695 = vmatprep.subr.mxu0 0.0
    %696 = vmatpush1.msra.mxu0 %v234
    %697 = vmatprep.subr.mxu0 0.0
    %698 = vmatpush1.msra.mxu0 %v235
    %699 = vmatprep.subr.mxu0 0.0
    %700 = vmatpush1.msra.mxu0 %v236
    %701 = vmatprep.subr.mxu0 0.0
    %702 = vmatpush1.msra.mxu0 %v237
    %703 = vmatprep.subr.mxu0 0.0
    %704 = vmatpush1.msra.mxu0 %v238
    %705 = vmatprep.subr.mxu0 0.0
    %706 = vmatpush1.msra.mxu0 %v239
    %707 = vmatprep.subr.mxu0 0.0
    %708 = vmatpush1.msra.mxu0 %v240
    %709 = vmatprep.subr.mxu0 0.0
    %710 = vmatpush1.msra.mxu0 %v241
    %711 = vmatprep.subr.mxu0 0.0
    %712 = vmatpush1.msra.mxu0 %v242
    %713 = vmatprep.subr.mxu0 0.0
    %714 = vmatpush1.msra.mxu0 %v243
    %715 = vmatprep.subr.mxu0 0.0
    %716 = vmatpush1.msra.mxu0 %v244
    %717 = vmatprep.subr.mxu0 0.0
    %718 = vmatpush1.msra.mxu0 %v245
    %719 = vmatprep.subr.mxu0 0.0
    %720 = vmatpush1.msra.mxu0 %v246
    %721 = vmatprep.subr.mxu0 0.0
    %722 = vmatpush1.msra.mxu0 %v247
    %723 = vmatprep.subr.mxu0 0.0
    %724 = vmatpush1.msra.mxu0 %v248
    %725 = vmatprep.subr.mxu0 0.0
    %726 = vmatpush1.msra.mxu0 %v249
    %727 = vmatprep.subr.mxu0 0.0
    %728 = vmatpush1.msra.mxu0 0.0
    %729 = vmatprep.subr.mxu0 0.0
    %730 = vmatpush1.msra.mxu0 0.0
    %731 = vmatprep.subr.mxu0 0.0
    %732 = vmatpush1.msra.mxu0 0.0
    %733 = vmatprep.subr.mxu0 0.0
    %734 = vmatpush1.msra.mxu0 0.0
    %735 = vmatprep.subr.mxu0 0.0
    %736 = vmatpush1.msra.mxu0 0.0
    %737 = vmatprep.subr.mxu0 0.0
    %738 = vmatpush1.msra.mxu0 0.0
    %739 = vmatprep.subr.mxu0 0.0
    %740 = vmatpush1.msra.mxu0 0.0
    %741 = vmatprep.subr.mxu0 0.0
    %742 = vmatpush1.msra.mxu0 0.0
    %743 = vmatprep.subr.mxu0 0.0
    %744 = vmatpush1.msra.mxu0 0.0
    %745 = vmatprep.subr.mxu0 0.0
    %746 = vmatpush1.msra.mxu0 0.0
    %747 = vmatprep.subr.mxu0 0.0
    %748 = vmatpush1.msra.mxu0 0.0
    %749 = vmatprep.subr.mxu0 0.0
    %750 = vmatpush1.msra.mxu0 0.0
    %751 = vmatprep.subr.mxu0 0.0
    %752 = vmatpush1.msra.mxu0 0.0
    %753 = vmatprep.subr.mxu0 0.0
    %754 = vmatpush1.msra.mxu0 0.0
    %755 = vmatprep.subr.mxu0 0.0
    %756 = vmatpush1.msra.mxu0 0.0
    %757 = vmatprep.subr.mxu0 0.0
    %758 = vmatpush1.msra.mxu0 0.0
    %759 = vmatprep.mubr.f32.mxu0 0.0
    %760 = vmatmul.mubr.f32.gmra.mrb[0].mxu0 %v692
    %v761 = vpop.f32.mrb[0].mxu0
    %v762 = vadd.f32 0.0, %v761
    %v763 = vpop.f32.mrb[0].mxu0
    %764 = vdwg.mxu0
    %v765 = vadd.f32 %v694, %v762
    %v766 = vtanh.pop %v765
    %s767 = scalar_lea.vmem [#allocation2], 56
    %v768 = vld [vmem:[%s767] sm:$0xff]
    %769 = vmatprep.subr.mxu0 0.0
    %770 = vmatpush1.msra.mxu0 %v234
    %771 = vmatprep.subr.mxu0 0.0
    %772 = vmatpush1.msra.mxu0 %v235
    %773 = vmatprep.subr.mxu0 0.0
    %774 = vmatpush1.msra.mxu0 %v236
    %775 = vmatprep.subr.mxu0 0.0
    %776 = vmatpush1.msra.mxu0 %v237
    %777 = vmatprep.subr.mxu0 0.0
    %778 = vmatpush1.msra.mxu0 %v238
    %779 = vmatprep.subr.mxu0 0.0
    %780 = vmatpush1.msra.mxu0 %v239
    %781 = vmatprep.subr.mxu0 0.0
    %782 = vmatpush1.msra.mxu0 %v240
    %783 = vmatprep.subr.mxu0 0.0
    %784 = vmatpush1.msra.mxu0 %v241
    %785 = vmatprep.subr.mxu0 0.0
    %786 = vmatpush1.msra.mxu0 %v242
    %787 = vmatprep.subr.mxu0 0.0
    %788 = vmatpush1.msra.mxu0 %v243
    %789 = vmatprep.subr.mxu0 0.0
    %790 = vmatpush1.msra.mxu0 %v244
    %791 = vmatprep.subr.mxu0 0.0
    %792 = vmatpush1.msra.mxu0 %v245
    %793 = vmatprep.subr.mxu0 0.0
    %794 = vmatpush1.msra.mxu0 %v246
    %795 = vmatprep.subr.mxu0 0.0
    %796 = vmatpush1.msra.mxu0 %v247
    %797 = vmatprep.subr.mxu0 0.0
    %798 = vmatpush1.msra.mxu0 %v248
    %799 = vmatprep.subr.mxu0 0.0
    %800 = vmatpush1.msra.mxu0 %v249
    %801 = vmatprep.subr.mxu0 0.0
    %802 = vmatpush1.msra.mxu0 0.0
    %803 = vmatprep.subr.mxu0 0.0
    %804 = vmatpush1.msra.mxu0 0.0
    %805 = vmatprep.subr.mxu0 0.0
    %806 = vmatpush1.msra.mxu0 0.0
    %807 = vmatprep.subr.mxu0 0.0
    %808 = vmatpush1.msra.mxu0 0.0
    %809 = vmatprep.subr.mxu0 0.0
    %810 = vmatpush1.msra.mxu0 0.0
    %811 = vmatprep.subr.mxu0 0.0
    %812 = vmatpush1.msra.mxu0 0.0
    %813 = vmatprep.subr.mxu0 0.0
    %814 = vmatpush1.msra.mxu0 0.0
    %815 = vmatprep.subr.mxu0 0.0
    %816 = vmatpush1.msra.mxu0 0.0
    %817 = vmatprep.subr.mxu0 0.0
    %818 = vmatpush1.msra.mxu0 0.0
    %819 = vmatprep.subr.mxu0 0.0
    %820 = vmatpush1.msra.mxu0 0.0
    %821 = vmatprep.subr.mxu0 0.0
    %822 = vmatpush1.msra.mxu0 0.0
    %823 = vmatprep.subr.mxu0 0.0
    %824 = vmatpush1.msra.mxu0 0.0
    %825 = vmatprep.subr.mxu0 0.0
    %826 = vmatpush1.msra.mxu0 0.0
    %827 = vmatprep.subr.mxu0 0.0
    %828 = vmatpush1.msra.mxu0 0.0
    %829 = vmatprep.subr.mxu0 0.0
    %830 = vmatpush1.msra.mxu0 0.0
    %831 = vmatprep.subr.mxu0 0.0
    %832 = vmatpush1.msra.mxu0 0.0
    %833 = vmatprep.mubr.f32.mxu0 0.0
    %834 = vmatmul.mubr.f32.gmra.mrb[0].mxu0 %v766
    %v835 = vpop.f32.mrb[0].mxu0
    %v836 = vadd.f32 0.0, %v835
    %v837 = vpop.f32.mrb[0].mxu0
    %838 = vdwg.mxu0
    %v839 = vadd.f32 %v768, %v836
    %v840 = vtanh.pop %v839
    %v841 = vld [vmem:[#allocation9] sm:$0xff]
    %v842 = vld [vmem:[#allocation9 + $0x8] sm:$0xff]
    %v843 = vld [vmem:[#allocation9 + $0x10] sm:$0xff]
    %v844 = vld [vmem:[#allocation9 + $0x18] sm:$0xff]
    %v845 = vld [vmem:[#allocation9 + $0x20] sm:$0xff]
    %v846 = vld [vmem:[#allocation9 + $0x28] sm:$0xff]
    %v847 = vld [vmem:[#allocation9 + $0x30] sm:$0xff]
    %v848 = vld [vmem:[#allocation9 + $0x38] sm:$0xff]
    %v849 = vld [vmem:[#allocation9 + $0x40] sm:$0xff]
    %v850 = vld [vmem:[#allocation9 + $0x48] sm:$0xff]
    %v851 = vld [vmem:[#allocation9 + $0x50] sm:$0xff]
    %v852 = vld [vmem:[#allocation9 + $0x58] sm:$0xff]
    %v853 = vld [vmem:[#allocation9 + $0x60] sm:$0xff]
    %v854 = vld [vmem:[#allocation9 + $0x68] sm:$0xff]
    %v855 = vld [vmem:[#allocation9 + $0x70] sm:$0xff]
    %v856 = vld [vmem:[#allocation9 + $0x78] sm:$0xff]
    %v857 = vld [vmem:[%s5] sm:$0x1]
    %v859 = vlaneseq
    %v860 = vshrl.u32 %v859, 7
    %v861 = vsub.s32 0, %v860
    %v862 = vrot.slane %v857, %v861
    %864 = vmatprep.subr.mxu0 0.0
    %865 = vmatpush1.msra.mxu0 %v841
    %866 = vmatprep.subr.mxu0 0.0
    %867 = vmatpush1.msra.mxu0 %v842
    %868 = vmatprep.subr.mxu0 0.0
    %869 = vmatpush1.msra.mxu0 %v843
    %870 = vmatprep.subr.mxu0 0.0
    %871 = vmatpush1.msra.mxu0 %v844
    %872 = vmatprep.subr.mxu0 0.0
    %873 = vmatpush1.msra.mxu0 %v845
    %874 = vmatprep.subr.mxu0 0.0
    %875 = vmatpush1.msra.mxu0 %v846
    %876 = vmatprep.subr.mxu0 0.0
    %877 = vmatpush1.msra.mxu0 %v847
    %878 = vmatprep.subr.mxu0 0.0
    %879 = vmatpush1.msra.mxu0 %v848
    %880 = vmatprep.subr.mxu0 0.0
    %881 = vmatpush1.msra.mxu0 %v849
    %882 = vmatprep.subr.mxu0 0.0
    %883 = vmatpush1.msra.mxu0 %v850
    %884 = vmatprep.subr.mxu0 0.0
    %885 = vmatpush1.msra.mxu0 %v851
    %886 = vmatprep.subr.mxu0 0.0
    %887 = vmatpush1.msra.mxu0 %v852
    %888 = vmatprep.subr.mxu0 0.0
    %889 = vmatpush1.msra.mxu0 %v853
    %890 = vmatprep.subr.mxu0 0.0
    %891 = vmatpush1.msra.mxu0 %v854
    %892 = vmatprep.subr.mxu0 0.0
    %893 = vmatpush1.msra.mxu0 %v855
    %894 = vmatprep.subr.mxu0 0.0
    %895 = vmatpush1.msra.mxu0 %v856
    %896 = vmatprep.subr.mxu0 0.0
    %897 = vmatpush1.msra.mxu0 0.0
    %898 = vmatprep.subr.mxu0 0.0
    %899 = vmatpush1.msra.mxu0 0.0
    %900 = vmatprep.subr.mxu0 0.0
    %901 = vmatpush1.msra.mxu0 0.0
    %902 = vmatprep.subr.mxu0 0.0
    %903 = vmatpush1.msra.mxu0 0.0
    %904 = vmatprep.subr.mxu0 0.0
    %905 = vmatpush1.msra.mxu0 0.0
    %906 = vmatprep.subr.mxu0 0.0
    %907 = vmatpush1.msra.mxu0 0.0
    %908 = vmatprep.subr.mxu0 0.0
    %909 = vmatpush1.msra.mxu0 0.0
    %910 = vmatprep.subr.mxu0 0.0
    %911 = vmatpush1.msra.mxu0 0.0
    %912 = vmatprep.subr.mxu0 0.0
    %913 = vmatpush1.msra.mxu0 0.0
    %914 = vmatprep.subr.mxu0 0.0
    %915 = vmatpush1.msra.mxu0 0.0
    %916 = vmatprep.subr.mxu0 0.0
    %917 = vmatpush1.msra.mxu0 0.0
    %918 = vmatprep.subr.mxu0 0.0
    %919 = vmatpush1.msra.mxu0 0.0
    %920 = vmatprep.subr.mxu0 0.0
    %921 = vmatpush1.msra.mxu0 0.0
    %922 = vmatprep.subr.mxu0 0.0
    %923 = vmatpush1.msra.mxu0 0.0
    %924 = vmatprep.subr.mxu0 0.0
    %925 = vmatpush1.msra.mxu0 0.0
    %926 = vmatprep.subr.mxu0 0.0
    %927 = vmatpush1.msra.mxu0 0.0
    %928 = vmatprep.mubr.f32.mxu0 0.0
    %929 = vmatmul.mubr.f32.gmra.mrb[0].mxu0 %v840
    %v930 = vpop.f32.mrb[0].mxu0
    %v931 = vadd.f32 %v862, %v930
    %v932 = vpop.f32.mrb[0].mxu0
    %933 = vdwg.mxu0
    %934 = vst [vmem:[#allocation11] sm:$0xff] %v931
    // Predicated region
    $region42: #{tpu_custom_call.1} parent=1 // pred_check
      _
    $region43: #{tpu_custom_call.1} parent=1 // pred_check_branch
      %936 = sbr.rel (0) target = $region45
    $region44: #{tpu_custom_call.1} parent=1 // pred_region
      %s938 = ssub.s32 128, 128
      %939 = vsyncadd [#allocation5], %s938
      %s941 = sshll.u32 [#allocation11], 4
      %s942 = int_to_ptr.vmem [resolvable:$true] %s941
      %944 = dma.vmem_to_hbm [thread:$0]  %s942, 128, %s6, [#allocation5]
    $region45: #{tpu_custom_call.1} parent=1 // pred_fallthru
      _
    // Predicated region
    $region46: #{tpu_custom_call.1} parent=1 // pred_check
      _
    $region47: #{tpu_custom_call.1} parent=1 // pred_check_branch
      %946 = sbr.rel (0) target = $region49
    $region48: #{tpu_custom_call.1} parent=1 // pred_region
      %947 = dma.done [#allocation5], 128
    $region49: #{tpu_custom_call.1} parent=1 // pred_fallthru
      _
    %948 = vsyncpa [#allocation4], 1
    %949 = vsyncpa [#allocation7], 1
    %950 = vsyncpa [#allocation10], 1
    %951 = vsyncpa [#allocation5], 1

</llo_original>
